<compile_context>
chip_gen: v5e
topology: v5e:2x2
jax: 0.10.0
libtpu: 0.0.40
codegen_flags: <defaults>
</compile_context>

<pallas_src>
import functools

import jax
import jax.numpy as jnp
from jax.experimental import pallas as pl
from jax.experimental.pallas import tpu as pltpu


_LANES = 1024       # lane-dense columns: 8 * 128 -> whole f32 vregs, unmasked stores
_BLOCK_ROWS = 512   # 512 * 1024 * 4 B = 2 MiB per output block (x2 double buffer = 4 MiB)


def _mean_fill_kernel(mean_ref, o_ref):
    # mean_ref: (1,) f32 scalar in SMEM; o_ref: (block_rows, 1024) f32 tile in VMEM.
    # Pure splat + full-vreg stores; no ones materialization, no VALU multiply.
    o_ref[...] = jnp.full(o_ref.shape, mean_ref[0], o_ref.dtype)


@functools.partial(jax.jit, static_argnames=("dim",))
def mean_model_forward(mean, dim):
    """Equivalent of MeanModel.forward(dim): returns mean * ones(dim) as f32[dim]."""
    mean1d = jnp.asarray(mean, dtype=jnp.float32).reshape(1)

    # Lane/sublane-dense output slab: pad dim up to a multiple of 1024 and view
    # it as (rows, 1024).
    padded = pl.cdiv(dim, _LANES) * _LANES
    rows = padded // _LANES
    # block_rows is either a multiple of 8 (512) or the full row extent, so the
    # (8, 128) BlockSpec divisibility rule is always satisfied; a partial last
    # block (rows % 512 != 0) is masked by Pallas automatically.
    block_rows = min(_BLOCK_ROWS, rows)
    grid = (pl.cdiv(rows, block_rows),)

    out2d = pl.pallas_call(
        _mean_fill_kernel,
        out_shape=jax.ShapeDtypeStruct((rows, _LANES), jnp.float32),
        grid=grid,
        in_specs=[pl.BlockSpec(memory_space=pltpu.SMEM)],        # scalar param, untiled
        out_specs=pl.BlockSpec((block_rows, _LANES), lambda i: (i, 0)),
        compiler_params=pltpu.CompilerParams(
            dimension_semantics=("parallel",),                   # shard fill across TCs (v7x)
        ),
        cost_estimate=pl.CostEstimate(
            flops=0,
            transcendentals=0,
            bytes_accessed=4 * padded + 4,                       # pure HBM writeback
        ),
    )(mean1d)

    out = out2d.reshape(-1)
    if padded != dim:
        out = out[:dim]
    return out


if __name__ == "__main__":
    # Deterministic parameter init (mirrors nn.Parameter(torch.randn(1))).
    key = jax.random.PRNGKey(0)
    mean_param = jax.random.normal(key, (1,), dtype=jnp.float32)

    # Small dim, as implied by the module's forward(dim) usage.
    dim = 256
    out = mean_model_forward(mean_param, dim)
    jax.block_until_ready(out)

    ref = mean_param[0] * jnp.ones((dim,), dtype=jnp.float32)
    assert out.shape == (dim,)
    assert out.dtype == jnp.float32
    assert jnp.allclose(out, ref), "Pallas output mismatch vs reference (dim=256)"

    # Also exercise the tiled, multi-block, non-multiple-of-1024 path.
    dim_big = 1_000_007
    out_big = mean_model_forward(mean_param, dim_big)
    jax.block_until_ready(out_big)
    assert out_big.shape == (dim_big,)
    assert out_big.dtype == jnp.float32
    assert jnp.allclose(out_big, mean_param[0]), "Pallas output mismatch (large dim)"

    print("KERNEL_OK")
</pallas_src>

<mosaic_0001>
module attributes {stable_mosaic.version = 11 : i64} {
  func.func @_mean_fill_kernel(%arg0: i32, %arg1: memref<1xf32, #tpu.memory_space<smem>>, %arg2: memref<1x1024xf32, #tpu.memory_space<vmem>>) attributes {dimension_semantics = [#tpu.dimension_semantics<parallel>], iteration_bounds = array<i64: 1>, scalar_prefetch = 0 : i64, scratch_operands = 0 : i64, tpu.core_type = #tpu.core_type<tc>, window_params = [{transform_indices = @transform_0, window_bounds = array<i64: 1>}, {transform_indices = @transform_1, window_bounds = array<i64: 1, 1024>}]} {
    %c0 = arith.constant 0 : index
    %0 = memref.load %arg1[%c0] : memref<1xf32, #tpu.memory_space<smem>>
    %1 = vector.broadcast %0 : f32 to vector<1x1024xf32>
    %c0_0 = arith.constant 0 : index
    %c0_1 = arith.constant 0 : index
    %2 = vector.load %arg2[%c0_0, %c0_1] : memref<1x1024xf32, #tpu.memory_space<vmem>>, vector<1x1024xf32>
    tpu.vector_store %arg2[%c0_0, %c0_1], %1 {strides = array<i32>} : memref<1x1024xf32, #tpu.memory_space<vmem>>, vector<1x1024xf32>,
    return
  }
  func.func @transform_0(%arg0: i32) -> i32 {
    %c0_i32 = arith.constant 0 : i32
    %c0_i32_0 = arith.constant 0 : i32
    return %c0_i32 : i32
  }
  func.func @transform_1(%arg0: i32) -> (i32, i32) {
    %c0_i32 = arith.constant 0 : i32
    %c0_i32_0 = arith.constant 0 : i32
    return %arg0, %c0_i32 : i32, i32
  }
}

</mosaic_0001>

<llo_original>
// kernel: mean_model_forward.1
$region0: #{mean_model_forward.1}
  #allocation0 [shape = 'u32[]', space=smem, size = 0x4, offset = 0x4, fixed_abs, tag = 'smem constant byte address 0x4 - core index']
  #allocation1 [shape = 'u32[72,128]{1,0:T(1,128)}', space=vmem, size = 0x9000, scoped, tag = 'internal scratch']
  #allocation2 [shape = 'f32[1]{0:T(128)S(6)}', space=smem, size = 0x200, scoped, tag = 'scoped memory for mean_model_forward.1']
  %s0 = inlined_call_operand.<no memory space> [shape: f32[1], index: 0, kind: input, shape index: {}]
  %s1 = inlined_call_operand.vmem [shape: f32[1,1024], index: 1, kind: output, shape index: {}]
  %s2 = sld [smem:[#allocation0]]
  $region14: #{mean_model_forward.1} parent=0
    _
  %s4 = ssub.s32 1, %s2
  %s5 = scalar_select 0, %s4, %s2
  %6 = sst [smem:[#allocation2]] %s0
  // Predicated region
  $region2: #{mean_model_forward.1} parent=0 // pred_check
    _
  $region3: #{mean_model_forward.1} parent=0 // pred_check_branch
    %8 = sbr.rel (0) target = $region5
  $region4: #{mean_model_forward.1} parent=0 // pred_region
    _
  $region5: #{mean_model_forward.1} parent=0 // pred_fallthru
    _
  %s9 = sld [smem:[#allocation2]]
  %v10 = vstv %s9
  %11 = vst [vmem:[%s1] sm:$0xff] %v10
  // Predicated region
  $region6: #{mean_model_forward.1} parent=0 // pred_check
    _
  $region7: #{mean_model_forward.1} parent=0 // pred_check_branch
    %13 = sbr.rel (0) target = $region9
  $region8: #{mean_model_forward.1} parent=0 // pred_region
    _
  $region9: #{mean_model_forward.1} parent=0 // pred_fallthru
    _
  // Predicated region
  $region10: #{mean_model_forward.1} parent=0 // pred_check
    _
  $region11: #{mean_model_forward.1} parent=0 // pred_check_branch
    %15 = sbr.rel (0) target = $region13
  $region12: #{mean_model_forward.1} parent=0 // pred_region
    _
  $region13: #{mean_model_forward.1} parent=0 // pred_fallthru
    _

</llo_original>
